<compile_context>
chip_gen: v6e
topology: v6e:2x2x1
jax: 0.10.0
libtpu: 0.0.40
codegen_flags: <defaults>
</compile_context>

<pallas_src>
import functools

import numpy as np

import jax
import jax.numpy as jnp
from jax.experimental import pallas as pl
from jax.experimental.pallas import tpu as pltpu

LANE = 128  # vreg lane width / MXU-friendly feature granularity


def _round_up(n: int, m: int) -> int:
    return ((n + m - 1) // m) * m


def make_mlp_kernel(num_hidden_layers: int):
    """Build a fused MLP kernel for a fixed (static) number of hidden layers."""

    def kernel(x_ref, *refs):
        # refs layout: w0, b0, w1, b1, ..., w_out, b_out, out_ref
        out_ref = refs[-1]
        param_refs = refs[:-1]
        compute_dtype = param_refs[0].dtype       # bf16 (default) or f32 path

        h = x_ref[...].astype(compute_dtype)
        # Hidden layers: Linear (f32 accumulate on the MXU) + bias + ReLU.
        for i in range(num_hidden_layers):
            w = param_refs[2 * i][...]            # (K_pad, N_pad) compute dtype
            b = param_refs[2 * i + 1][...]        # (1, N_pad)     f32
            acc = jnp.dot(h, w, preferred_element_type=jnp.float32) + b
            h = jnp.maximum(acc, 0.0).astype(compute_dtype)
        # Output layer: Linear, no activation.
        w_out = param_refs[-2][...]
        b_out = param_refs[-1][...]
        y = jnp.dot(h, w_out, preferred_element_type=jnp.float32) + b_out
        out_ref[...] = y.astype(out_ref.dtype)

    return kernel


def prepare_params(params, compute_dtype=jnp.bfloat16):
    """Pad + cast the parameters ONCE (call this outside the per-step forward).

    Args:
      params: list of (W, b); W is (fan_in, fan_out), b is (1, fan_out), f32.
              The last pair is the output layer (no activation).
      compute_dtype: matmul input dtype (bf16 default; f32 for exact parity
                     with the torch module).
    Returns:
      Flat tuple (w0, b0, w1, b1, ..., w_out, b_out) with hidden/output
      feature dims zero-padded to multiples of 128.  The input feature dim of
      W0 is intentionally left unpadded so x needs no lane padding.
    """
    flat = []
    prev_dim = params[0][0].shape[0]              # input dim: NOT lane-padded
    for (w, b) in params:
        fi, fo = w.shape
        fo_pad = _round_up(fo, LANE)
        w_p = jnp.zeros((prev_dim, fo_pad), compute_dtype)
        w_p = w_p.at[:fi, :fo].set(w.astype(compute_dtype))
        b_p = jnp.zeros((1, fo_pad), jnp.float32)
        b_p = b_p.at[:, :fo].set(b.astype(jnp.float32))
        flat += [w_p, b_p]
        prev_dim = fo_pad
    return tuple(flat)


def _resident_spec(shape, single_buffer: bool):
    """Grid-invariant full-array block (stays VMEM-resident across grid steps).

    With a constant index_map the block is only DMA'd once; single-buffering
    it (pl.Buffered(1)) additionally halves its VMEM footprint since it never
    changes.  Falls back to the default spec if this jax build lacks the
    pipeline_mode kwarg.
    """
    index_map = lambda i: (0, 0)
    if single_buffer and hasattr(pl, "Buffered"):
        try:
            return pl.BlockSpec(shape, index_map, pipeline_mode=pl.Buffered(1))
        except TypeError:
            pass
    return pl.BlockSpec(shape, index_map)


def neural_net_forward(x, flat_params, out_dim, *, batch_tile=None,
                       out_dtype=jnp.float32, unpad=True,
                       single_buffer_params=True):
    """Fused MLP forward via a single Pallas kernel.

    Args:
      x: (batch, input_size) array (any float dtype; cast in-kernel).
      flat_params: output of prepare_params().
      out_dim: true (unpadded) output feature count.
    Returns:
      (batch, out_dim) array of out_dtype (or the padded kernel output if
      unpad=False, letting the caller fuse/skip the slice).
    """
    batch, in_dim = x.shape
    assert in_dim == flat_params[0].shape[0], "x feature dim != W0 rows"
    num_layers = len(flat_params) // 2
    num_hidden = num_layers - 1
    out_pad = flat_params[-1].shape[1]

    # --- Batch tiling (16-aligned for bf16 sublane packing). ---
    if batch_tile is None:
        # One tile up to 512 rows (amortizes grid-step overhead, tall MXU LHS);
        # 512-row tiles beyond that so grid >= 2 and the "parallel" batch axis
        # can feed both v7x TensorCores while x/out stream/double-buffer.
        batch_tile = _round_up(batch, 16) if batch <= 512 else 512
    batch_tile = _round_up(batch_tile, 16)
    padded_batch = _round_up(batch, batch_tile)
    if padded_batch != batch:
        # Row-only zero padding (no-op when batch is already a tile multiple).
        x = jnp.pad(x, ((0, padded_batch - batch), (0, 0)))
    grid = (padded_batch // batch_tile,)

    kernel = make_mlp_kernel(num_hidden)

    # x / out stream per batch tile; weights & biases are full-array,
    # grid-invariant blocks (VMEM-resident, single-buffered).
    # TODO(synk): for hidden widths >~2K (v7x has only 64 MiB VMEM), stream
    # each layer's weight through an inner pltpu.emit_pipeline over the
    # out-feature dim instead of holding whole matrices VMEM-resident.
    in_specs = [pl.BlockSpec((batch_tile, in_dim), lambda i: (i, 0))]
    for p in flat_params:
        in_specs.append(_resident_spec(p.shape, single_buffer_params))
    out_spec = pl.BlockSpec((batch_tile, out_pad), lambda i: (i, 0))

    # --- VMEM sizing: raise the scoped limit only when actually needed. ---
    param_bytes = sum(int(p.size) * p.dtype.itemsize for p in flat_params)
    buf = 1 if single_buffer_params else 2
    out_itemsize = np.dtype(out_dtype).itemsize
    max_width = max([in_dim] + [flat_params[2 * i].shape[1]
                                for i in range(num_layers)])
    stream_bytes = 2 * batch_tile * (in_dim * x.dtype.itemsize
                                     + out_pad * out_itemsize)
    act_bytes = 4 * batch_tile * max_width * 4          # live f32 intermediates
    vmem_need = int(1.25 * (buf * param_bytes + stream_bytes + act_bytes))
    vmem_limit = (None if vmem_need <= (16 << 20)
                  else min(64 << 20, max(32 << 20, vmem_need)))

    flops = 2 * padded_batch * sum(
        flat_params[2 * i].shape[0] * flat_params[2 * i].shape[1]
        for i in range(num_layers))
    bytes_accessed = (padded_batch * in_dim * x.dtype.itemsize
                      + param_bytes
                      + padded_batch * out_pad * out_itemsize)
    cost = pl.CostEstimate(flops=flops, transcendentals=0,
                           bytes_accessed=bytes_accessed)

    y_pad = pl.pallas_call(
        kernel,
        out_shape=jax.ShapeDtypeStruct((padded_batch, out_pad), out_dtype),
        grid_spec=pltpu.PrefetchScalarGridSpec(
            num_scalar_prefetch=0,
            grid=grid,
            in_specs=in_specs,
            out_specs=out_spec,
        ),
        compiler_params=pltpu.CompilerParams(
            dimension_semantics=("parallel",),
            vmem_limit_bytes=vmem_limit,
        ),
        cost_estimate=cost,
    )(x, *flat_params)

    if not unpad:
        return y_pad
    # Under jit this slice fuses with the consumer (no extra HBM pass here).
    return y_pad[:batch, :out_dim]


def init_params(key, input_size, hidden_sizes, output_size):
    """Parameter init mirroring torch.nn.Linear's default
    (uniform(-1/sqrt(fan_in), 1/sqrt(fan_in))), stored as (in, out) + (1, out)."""
    sizes = [input_size] + list(hidden_sizes)
    dims = list(zip(sizes[:-1], sizes[1:])) + [(sizes[-1], output_size)]
    params = []
    for (fan_in, fan_out) in dims:
        key, kw, kb = jax.random.split(key, 3)
        bound = 1.0 / jnp.sqrt(float(fan_in))
        w = jax.random.uniform(kw, (fan_in, fan_out), jnp.float32, -bound, bound)
        b = jax.random.uniform(kb, (1, fan_out), jnp.float32, -bound, bound)
        params.append((w, b))
    return params


def reference_forward_bf16(x, params):
    """Pure-JAX reference with the same bf16-input / f32-accumulate precision."""
    h = x.astype(jnp.bfloat16)
    for (w, b) in params[:-1]:
        acc = jnp.dot(h, w.astype(jnp.bfloat16),
                      preferred_element_type=jnp.float32) + b
        h = jnp.maximum(acc, 0.0).astype(jnp.bfloat16)
    w, b = params[-1]
    return jnp.dot(h, w.astype(jnp.bfloat16),
                   preferred_element_type=jnp.float32) + b


def reference_forward_f32(x, params):
    """Full-f32 reference (matches the torch module exactly)."""
    h = x
    for (w, b) in params[:-1]:
        h = jnp.maximum(h @ w + b, 0.0)
    w, b = params[-1]
    return h @ w + b


if __name__ == "__main__":
    # NeuralNet(input_size=32, hidden_sizes=[64, 64], output_size=10)
    # applied to a small batch of flattened inputs.
    input_size = 32
    hidden_sizes = [64, 64]
    output_size = 10
    batch = 8

    key = jax.random.PRNGKey(0)
    key, kx = jax.random.split(key)
    x = jax.random.normal(kx, (batch, input_size), dtype=jnp.float32)

    params = init_params(key, input_size, hidden_sizes, output_size)

    # Pad / bf16-cast the parameters ONCE, outside the per-step forward path.
    flat_params = prepare_params(params)

    fwd = jax.jit(functools.partial(neural_net_forward, out_dim=output_size))
    y = fwd(x, flat_params)
    jax.block_until_ready(y)

    assert y.shape == (batch, output_size)
    assert y.dtype == jnp.float32

    # Tight check against a precision-matched (bf16-in, f32-acc) reference.
    y_ref_bf16 = reference_forward_bf16(x, params)
    assert jnp.allclose(y, y_ref_bf16, atol=1e-3, rtol=1e-3)

    # Loose sanity check against the exact f32 torch-equivalent forward.
    # (bf16 weights are an intentional precision deviation; use
    #  prepare_params(..., compute_dtype=jnp.float32) for exact parity.)
    y_ref_f32 = reference_forward_f32(x, params)
    assert jnp.allclose(y, y_ref_f32, atol=5e-2, rtol=5e-2)

    print("KERNEL_OK")
</pallas_src>

<mosaic_0001>
module attributes {stable_mosaic.version = 11 : i64} {
  func.func @kernel(%arg0: i32, %arg1: memref<16x32xf32, #tpu.memory_space<vmem>>, %arg2: memref<32x128xbf16, #tpu.memory_space<vmem>>, %arg3: memref<1x128xf32, #tpu.memory_space<vmem>>, %arg4: memref<128x128xbf16, #tpu.memory_space<vmem>>, %arg5: memref<1x128xf32, #tpu.memory_space<vmem>>, %arg6: memref<128x128xbf16, #tpu.memory_space<vmem>>, %arg7: memref<1x128xf32, #tpu.memory_space<vmem>>, %arg8: memref<16x128xf32, #tpu.memory_space<vmem>>) attributes {dimension_semantics = [#tpu.dimension_semantics<parallel>], iteration_bounds = array<i64: 1>, scalar_prefetch = 0 : i64, scratch_operands = 0 : i64, tpu.core_type = #tpu.core_type<tc>, window_params = [{transform_indices = @transform_0, window_bounds = array<i64: 16, 32>}, {pipeline_mode = #tpu.pipeline_mode<synchronous>, transform_indices = @transform_1, window_bounds = array<i64: 32, 128>}, {pipeline_mode = #tpu.pipeline_mode<synchronous>, transform_indices = @transform_2, window_bounds = array<i64: 1, 128>}, {pipeline_mode = #tpu.pipeline_mode<synchronous>, transform_indices = @transform_3, window_bounds = array<i64: 128, 128>}, {pipeline_mode = #tpu.pipeline_mode<synchronous>, transform_indices = @transform_4, window_bounds = array<i64: 1, 128>}, {pipeline_mode = #tpu.pipeline_mode<synchronous>, transform_indices = @transform_5, window_bounds = array<i64: 128, 128>}, {pipeline_mode = #tpu.pipeline_mode<synchronous>, transform_indices = @transform_6, window_bounds = array<i64: 1, 128>}, {transform_indices = @transform_7, window_bounds = array<i64: 16, 128>}]} {
    %c0 = arith.constant 0 : index
    %c0_0 = arith.constant 0 : index
    %0 = vector.load %arg1[%c0, %c0_0] : memref<16x32xf32, #tpu.memory_space<vmem>>, vector<16x32xf32>
    %1 = arith.truncf %0 : vector<16x32xf32> to vector<16x32xbf16>
    %c0_1 = arith.constant 0 : index
    %c0_2 = arith.constant 0 : index
    %2 = vector.load %arg2[%c0_1, %c0_2] : memref<32x128xbf16, #tpu.memory_space<vmem>>, vector<32x128xbf16>
    %c0_3 = arith.constant 0 : index
    %c0_4 = arith.constant 0 : index
    %3 = vector.load %arg3[%c0_3, %c0_4] : memref<1x128xf32, #tpu.memory_space<vmem>>, vector<1x128xf32>
    %cst = arith.constant dense<0.000000e+00> : vector<16x128xf32>
    %4 = tpu.matmul %1, %2, %cst {dimension_numbers = #tpu.dot_dimension_numbers<[1], [0], [0], [1], [0, 0, 1, 1], [], []>} : vector<16x32xbf16>, vector<32x128xbf16>, vector<16x128xf32> -> vector<16x128xf32>
    %5 = vector.broadcast %3 : vector<1x128xf32> to vector<16x128xf32>
    %6 = arith.addf %4, %5 : vector<16x128xf32>
    %cst_5 = arith.constant 0.000000e+00 : f32
    %7 = vector.broadcast %cst_5 : f32 to vector<16x128xf32>
    %8 = arith.maximumf %6, %7 : vector<16x128xf32>
    %9 = arith.truncf %8 : vector<16x128xf32> to vector<16x128xbf16>
    %c0_6 = arith.constant 0 : index
    %c0_7 = arith.constant 0 : index
    %10 = vector.load %arg4[%c0_6, %c0_7] : memref<128x128xbf16, #tpu.memory_space<vmem>>, vector<128x128xbf16>
    %c0_8 = arith.constant 0 : index
    %c0_9 = arith.constant 0 : index
    %11 = vector.load %arg5[%c0_8, %c0_9] : memref<1x128xf32, #tpu.memory_space<vmem>>, vector<1x128xf32>
    %cst_10 = arith.constant dense<0.000000e+00> : vector<16x128xf32>
    %12 = tpu.matmul %9, %10, %cst_10 {dimension_numbers = #tpu.dot_dimension_numbers<[1], [0], [0], [1], [0, 0, 1, 1], [], []>} : vector<16x128xbf16>, vector<128x128xbf16>, vector<16x128xf32> -> vector<16x128xf32>
    %13 = vector.broadcast %11 : vector<1x128xf32> to vector<16x128xf32>
    %14 = arith.addf %12, %13 : vector<16x128xf32>
    %cst_11 = arith.constant 0.000000e+00 : f32
    %15 = vector.broadcast %cst_11 : f32 to vector<16x128xf32>
    %16 = arith.maximumf %14, %15 : vector<16x128xf32>
    %17 = arith.truncf %16 : vector<16x128xf32> to vector<16x128xbf16>
    %c0_12 = arith.constant 0 : index
    %c0_13 = arith.constant 0 : index
    %18 = vector.load %arg6[%c0_12, %c0_13] : memref<128x128xbf16, #tpu.memory_space<vmem>>, vector<128x128xbf16>
    %c0_14 = arith.constant 0 : index
    %c0_15 = arith.constant 0 : index
    %19 = vector.load %arg7[%c0_14, %c0_15] : memref<1x128xf32, #tpu.memory_space<vmem>>, vector<1x128xf32>
    %cst_16 = arith.constant dense<0.000000e+00> : vector<16x128xf32>
    %20 = tpu.matmul %17, %18, %cst_16 {dimension_numbers = #tpu.dot_dimension_numbers<[1], [0], [0], [1], [0, 0, 1, 1], [], []>} : vector<16x128xbf16>, vector<128x128xbf16>, vector<16x128xf32> -> vector<16x128xf32>
    %21 = vector.broadcast %19 : vector<1x128xf32> to vector<16x128xf32>
    %22 = arith.addf %20, %21 : vector<16x128xf32>
    %c0_17 = arith.constant 0 : index
    %c0_18 = arith.constant 0 : index
    %23 = vector.load %arg8[%c0_17, %c0_18] : memref<16x128xf32, #tpu.memory_space<vmem>>, vector<16x128xf32>
    tpu.vector_store %arg8[%c0_17, %c0_18], %22 {strides = array<i32>} : memref<16x128xf32, #tpu.memory_space<vmem>>, vector<16x128xf32>,
    return
  }
  func.func @transform_0(%arg0: i32) -> (i32, i32) {
    %c0_i32 = arith.constant 0 : i32
    %c0_i32_0 = arith.constant 0 : i32
    return %arg0, %c0_i32 : i32, i32
  }
  func.func @transform_1(%arg0: i32) -> (i32, i32) {
    %c0_i32 = arith.constant 0 : i32
    %c0_i32_0 = arith.constant 0 : i32
    %c0_i32_1 = arith.constant 0 : i32
    return %c0_i32, %c0_i32_0 : i32, i32
  }
  func.func @transform_2(%arg0: i32) -> (i32, i32) {
    %c0_i32 = arith.constant 0 : i32
    %c0_i32_0 = arith.constant 0 : i32
    %c0_i32_1 = arith.constant 0 : i32
    return %c0_i32, %c0_i32_0 : i32, i32
  }
  func.func @transform_3(%arg0: i32) -> (i32, i32) {
    %c0_i32 = arith.constant 0 : i32
    %c0_i32_0 = arith.constant 0 : i32
    %c0_i32_1 = arith.constant 0 : i32
    return %c0_i32, %c0_i32_0 : i32, i32
  }
  func.func @transform_4(%arg0: i32) -> (i32, i32) {
    %c0_i32 = arith.constant 0 : i32
    %c0_i32_0 = arith.constant 0 : i32
    %c0_i32_1 = arith.constant 0 : i32
    return %c0_i32, %c0_i32_0 : i32, i32
  }
  func.func @transform_5(%arg0: i32) -> (i32, i32) {
    %c0_i32 = arith.constant 0 : i32
    %c0_i32_0 = arith.constant 0 : i32
    %c0_i32_1 = arith.constant 0 : i32
    return %c0_i32, %c0_i32_0 : i32, i32
  }
  func.func @transform_6(%arg0: i32) -> (i32, i32) {
    %c0_i32 = arith.constant 0 : i32
    %c0_i32_0 = arith.constant 0 : i32
    %c0_i32_1 = arith.constant 0 : i32
    return %c0_i32, %c0_i32_0 : i32, i32
  }
  func.func @transform_7(%arg0: i32) -> (i32, i32) {
    %c0_i32 = arith.constant 0 : i32
    %c0_i32_0 = arith.constant 0 : i32
    return %arg0, %c0_i32 : i32, i32
  }
}

</mosaic_0001>

<llo_original>
// kernel: neural_net_forward.1
$region0: #{neural_net_forward.1}
  #allocation0 [shape = 'u32[]', space=smem, size = 0x4, offset = 0x4, fixed_abs, tag = 'smem constant byte address 0x4 - core index']
  #allocation1 [shape = 'u32[144,128]{1,0:T(1,128)}', space=vmem, size = 0x12000, scoped, tag = 'internal scratch']
  %s0 = inlined_call_operand.vmem [shape: f32[16,32], index: 0, kind: input, shape index: {}]
  %s1 = inlined_call_operand.vmem [shape: bf16[32,128], index: 1, kind: input, shape index: {}]
  %s2 = inlined_call_operand.vmem [shape: f32[1,128], index: 2, kind: input, shape index: {}]
  %s3 = inlined_call_operand.hbm [shape: bf16[128,128], index: 3, kind: input, shape index: {}]
  %s4 = inlined_call_operand.vmem [shape: f32[1,128], index: 4, kind: input, shape index: {}]
  %s5 = inlined_call_operand.hbm [shape: bf16[128,128], index: 5, kind: input, shape index: {}]
  %s6 = inlined_call_operand.vmem [shape: f32[1,128], index: 6, kind: input, shape index: {}]
  %s7 = inlined_call_operand.vmem [shape: f32[16,128], index: 7, kind: output, shape index: {}]
  %s8 = sld [smem:[#allocation0]]
  $region46: #{neural_net_forward.1} parent=0
    _
  %s10 = ssub.s32 1, %s8
  %s11 = scalar_select 0, %s10, %s8
  $region1: #{neural_net_forward.1} parent=0
    #allocation2 [shape = 'u8[32768]{0}', space=vmem, size = 0x8000, scoped, tag = 'input window, operand 3, single buffered']
    #allocation3 [shape = 's32[1]{0}', space=sflag, size = 0x4, scoped, tag = 'scoped memory for neural_net_forward.1']
    #allocation4 [shape = 'u8[32768]{0}', space=vmem, size = 0x8000, scoped, tag = 'input window, operand 5, single buffered']
    #allocation5 [shape = 's32[1]{0}', space=sflag, size = 0x4, scoped, tag = 'scoped memory for neural_net_forward.1']
    %12 = vsyncpa [#allocation3], 0
    %13 = vsyncpa [#allocation5], 0
    // Predicated region
    $region2: #{neural_net_forward.1} parent=1 // pred_check
      _
    $region3: #{neural_net_forward.1} parent=1 // pred_check_branch
      %15 = sbr.rel (0) target = $region5
    $region4: #{neural_net_forward.1} parent=1 // pred_region
      _
    $region5: #{neural_net_forward.1} parent=1 // pred_fallthru
      _
    // Predicated region
    $region6: #{neural_net_forward.1} parent=1 // pred_check
      _
    $region7: #{neural_net_forward.1} parent=1 // pred_check_branch
      %17 = sbr.rel (0) target = $region9
    $region8: #{neural_net_forward.1} parent=1 // pred_region
      _
    $region9: #{neural_net_forward.1} parent=1 // pred_fallthru
      _
    // Predicated region
    $region10: #{neural_net_forward.1} parent=1 // pred_check
      _
    $region11: #{neural_net_forward.1} parent=1 // pred_check_branch
      %19 = sbr.rel (0) target = $region13
    $region12: #{neural_net_forward.1} parent=1 // pred_region
      _
    $region13: #{neural_net_forward.1} parent=1 // pred_fallthru
      _
    // Predicated region
    $region14: #{neural_net_forward.1} parent=1 // pred_check
      _
    $region15: #{neural_net_forward.1} parent=1 // pred_check_branch
      %21 = sbr.rel (0) target = $region17
    $region16: #{neural_net_forward.1} parent=1 // pred_region
      %s23 = ssub.s32 1024, 1024
      %24 = vsyncadd [#allocation3], %s23
      %s25 = sshll.u32 [#allocation2], 4
      %s26 = int_to_ptr.vmem [resolvable:$true] %s25
      %31 = dma.hbm_to_vmem [thread:$0]  %s3, 1024, %s26, [#allocation3], 64, 64, 4
    $region17: #{neural_net_forward.1} parent=1 // pred_fallthru
      _
    // Predicated region
    $region18: #{neural_net_forward.1} parent=1 // pred_check
      _
    $region19: #{neural_net_forward.1} parent=1 // pred_check_branch
      %33 = sbr.rel (0) target = $region21
    $region20: #{neural_net_forward.1} parent=1 // pred_region
      _
    $region21: #{neural_net_forward.1} parent=1 // pred_fallthru
      _
    // Predicated region
    $region22: #{neural_net_forward.1} parent=1 // pred_check
      _
    $region23: #{neural_net_forward.1} parent=1 // pred_check_branch
      %35 = sbr.rel (0) target = $region25
    $region24: #{neural_net_forward.1} parent=1 // pred_region
      %s37 = ssub.s32 1024, 1024
      %38 = vsyncadd [#allocation5], %s37
      %s39 = sshll.u32 [#allocation4], 4
      %s40 = int_to_ptr.vmem [resolvable:$true] %s39
      %45 = dma.hbm_to_vmem [thread:$0]  %s5, 1024, %s40, [#allocation5], 64, 64, 4
    $region25: #{neural_net_forward.1} parent=1 // pred_fallthru
      _
    // Predicated region
    $region26: #{neural_net_forward.1} parent=1 // pred_check
      _
    $region27: #{neural_net_forward.1} parent=1 // pred_check_branch
      %47 = sbr.rel (0) target = $region29
    $region28: #{neural_net_forward.1} parent=1 // pred_region
      _
    $region29: #{neural_net_forward.1} parent=1 // pred_fallthru
      _
    // Predicated region
    $region30: #{neural_net_forward.1} parent=1 // pred_check
      _
    $region31: #{neural_net_forward.1} parent=1 // pred_check_branch
      %49 = sbr.rel (0) target = $region33
    $region32: #{neural_net_forward.1} parent=1 // pred_region
      %50 = dma.done [#allocation3], 1024
    $region33: #{neural_net_forward.1} parent=1 // pred_fallthru
      _
    // Predicated region
    $region34: #{neural_net_forward.1} parent=1 // pred_check
      _
    $region35: #{neural_net_forward.1} parent=1 // pred_check_branch
      %52 = sbr.rel (0) target = $region37
    $region36: #{neural_net_forward.1} parent=1 // pred_region
      %53 = dma.done [#allocation5], 1024
    $region37: #{neural_net_forward.1} parent=1 // pred_fallthru
      _
    %v55 = vld [vmem:[%s0] sm:$0xff]
    %v56 = vld [vmem:[%s0 + $0x8] sm:$0xff]
    %v57 = vpack.c.bf16 %v56, %v55
    %v58 = vld [vmem:[%s1] sm:$0xf]
    %v59 = vld [vmem:[%s1 + $0x4] sm:$0xf]
    %v60 = vld [vmem:[%s1 + $0x8] sm:$0xf]
    %v61 = vld [vmem:[%s1 + $0xc] sm:$0xf]
    %v62 = vld [vmem:[%s2] sm:$0x1]
    %v64 = vlaneseq
    %v65 = vshrl.u32 %v64, 7
    %v66 = vsub.s32 0, %v65
    %v67 = vrot.slane %v62, %v66
    %v73 = vunpack.c.l.b16 %v58
    %v74 = vunpack.c.l.b16 %v59
    %v75 = vunpack.c.l.b16 %v60
    %v76 = vunpack.c.l.b16 %v61
    %v77 = vpack.c.b16 %v74, %v73
    %v78 = vpack.c.b16 %v76, %v75
    %vm81 = vcmask 261120
    %v83 = vsel %vm81, %v57, 0
    %85 = vmatprep.subr.bf16.mxu0 0
    %86 = vmatpush1.bf16.msra.mxu0 0
    %87 = vmatprep.subr.bf16.mxu0 0
    %88 = vmatpush1.bf16.msra.mxu0 0
    %89 = vmatprep.subr.bf16.mxu0 0
    %90 = vmatpush1.bf16.msra.mxu0 0
    %91 = vmatprep.subr.bf16.mxu0 0
    %92 = vmatpush1.bf16.msra.mxu0 0
    %93 = vmatprep.subr.bf16.mxu0 0
    %94 = vmatpush1.bf16.msra.mxu0 0
    %95 = vmatprep.subr.bf16.mxu0 0
    %96 = vmatpush1.bf16.msra.mxu0 0
    %97 = vmatprep.subr.bf16.mxu0 0
    %98 = vmatpush1.bf16.msra.mxu0 %v78
    %99 = vmatprep.subr.bf16.mxu0 0
    %100 = vmatpush1.bf16.msra.mxu0 %v77
    %101 = vmatprep.subr.bf16.mxu0 0
    %102 = vmatpush2.bf16.msra.mxu0 0
    %103 = vmatprep.subr.bf16.mxu0 0
    %104 = vmatpush2.bf16.msra.mxu0 0
    %105 = vmatprep.subr.bf16.mxu0 0
    %106 = vmatpush2.bf16.msra.mxu0 0
    %107 = vmatprep.subr.bf16.mxu0 0
    %108 = vmatpush2.bf16.msra.mxu0 0
    %109 = vmatprep.subr.bf16.mxu0 0
    %110 = vmatpush2.bf16.msra.mxu0 0
    %111 = vmatprep.subr.bf16.mxu0 0
    %112 = vmatpush2.bf16.msra.mxu0 0
    %113 = vmatprep.subr.bf16.mxu0 0
    %114 = vmatpush2.bf16.msra.mxu0 0
    %115 = vmatprep.subr.bf16.mxu0 0
    %116 = vmatpush2.bf16.msra.mxu0 0
    %117 = vmatprep.mubr.bf16.mxu0 0
    %118 = vmatmul.mubr.bf16.gmra.mxu0 %v83
    %v119 = vpop.f32.mrf.mxu0
    %v120 = vadd.f32 %v67, %v119
    %v121 = vpop.f32.mrf.mxu0
    %v122 = vpop.f32.mrf.mxu0
    %v123 = vadd.f32 %v67, %v122
    %v124 = vpop.f32.mrf.mxu0
    %125 = vdwg.mxu0
    %v126 = vmax.f32 %v120, 0.0
    %v127 = vmax.f32 %v123, 0.0
    %v128 = vpack.c.bf16 %v127, %v126
    %v129 = vld [vmem:[#allocation2] sm:$0xf]
    %v130 = vld [vmem:[#allocation2 + $0x4] sm:$0xf]
    %v131 = vld [vmem:[#allocation2 + $0x8] sm:$0xf]
    %v132 = vld [vmem:[#allocation2 + $0xc] sm:$0xf]
    %v133 = vld [vmem:[#allocation2 + $0x10] sm:$0xf]
    %v134 = vld [vmem:[#allocation2 + $0x14] sm:$0xf]
    %v135 = vld [vmem:[#allocation2 + $0x18] sm:$0xf]
    %v136 = vld [vmem:[#allocation2 + $0x1c] sm:$0xf]
    %v137 = vld [vmem:[#allocation2 + $0x20] sm:$0xf]
    %v138 = vld [vmem:[#allocation2 + $0x24] sm:$0xf]
    %v139 = vld [vmem:[#allocation2 + $0x28] sm:$0xf]
    %v140 = vld [vmem:[#allocation2 + $0x2c] sm:$0xf]
    %v141 = vld [vmem:[#allocation2 + $0x30] sm:$0xf]
    %v142 = vld [vmem:[#allocation2 + $0x34] sm:$0xf]
    %v143 = vld [vmem:[#allocation2 + $0x38] sm:$0xf]
    %v144 = vld [vmem:[#allocation2 + $0x3c] sm:$0xf]
    %v145 = vld [vmem:[%s4] sm:$0x1]
    %v147 = vlaneseq
    %v148 = vshrl.u32 %v147, 7
    %v149 = vsub.s32 0, %v148
    %v150 = vrot.slane %v145, %v149
    %v168 = vunpack.c.l.b16 %v129
    %v169 = vunpack.c.l.b16 %v130
    %v170 = vunpack.c.l.b16 %v131
    %v171 = vunpack.c.l.b16 %v132
    %v172 = vunpack.c.l.b16 %v133
    %v173 = vunpack.c.l.b16 %v134
    %v174 = vunpack.c.l.b16 %v135
    %v175 = vunpack.c.l.b16 %v136
    %v176 = vunpack.c.l.b16 %v137
    %v177 = vunpack.c.l.b16 %v138
    %v178 = vunpack.c.l.b16 %v139
    %v179 = vunpack.c.l.b16 %v140
    %v180 = vunpack.c.l.b16 %v141
    %v181 = vunpack.c.l.b16 %v142
    %v182 = vunpack.c.l.b16 %v143
    %v183 = vunpack.c.l.b16 %v144
    %v184 = vpack.c.b16 %v169, %v168
    %v185 = vpack.c.b16 %v171, %v170
    %v186 = vpack.c.b16 %v173, %v172
    %v187 = vpack.c.b16 %v175, %v174
    %v188 = vpack.c.b16 %v177, %v176
    %v189 = vpack.c.b16 %v179, %v178
    %v190 = vpack.c.b16 %v181, %v180
    %v191 = vpack.c.b16 %v183, %v182
    %200 = vmatprep.subr.bf16.mxu0 0
    %201 = vmatpush1.bf16.msra.mxu0 %v191
    %202 = vmatprep.subr.bf16.mxu0 0
    %203 = vmatpush1.bf16.msra.mxu0 %v190
    %204 = vmatprep.subr.bf16.mxu0 0
    %205 = vmatpush1.bf16.msra.mxu0 %v189
    %206 = vmatprep.subr.bf16.mxu0 0
    %207 = vmatpush1.bf16.msra.mxu0 %v188
    %208 = vmatprep.subr.bf16.mxu0 0
    %209 = vmatpush1.bf16.msra.mxu0 %v187
    %210 = vmatprep.subr.bf16.mxu0 0
    %211 = vmatpush1.bf16.msra.mxu0 %v186
    %212 = vmatprep.subr.bf16.mxu0 0
    %213 = vmatpush1.bf16.msra.mxu0 %v185
    %214 = vmatprep.subr.bf16.mxu0 0
    %215 = vmatpush1.bf16.msra.mxu0 %v184
    %216 = vmatprep.subr.bf16.mxu0 0
    %217 = vmatpush2.bf16.msra.mxu0 0
    %218 = vmatprep.subr.bf16.mxu0 0
    %219 = vmatpush2.bf16.msra.mxu0 0
    %220 = vmatprep.subr.bf16.mxu0 0
    %221 = vmatpush2.bf16.msra.mxu0 0
    %222 = vmatprep.subr.bf16.mxu0 0
    %223 = vmatpush2.bf16.msra.mxu0 0
    %224 = vmatprep.subr.bf16.mxu0 0
    %225 = vmatpush2.bf16.msra.mxu0 0
    %226 = vmatprep.subr.bf16.mxu0 0
    %227 = vmatpush2.bf16.msra.mxu0 0
    %228 = vmatprep.subr.bf16.mxu0 0
    %229 = vmatpush2.bf16.msra.mxu0 0
    %230 = vmatprep.subr.bf16.mxu0 0
    %231 = vmatpush2.bf16.msra.mxu0 0
    %232 = vmatprep.mubr.bf16.mxu0 0
    %233 = vmatmul.mubr.bf16.gmra.mxu0 %v128
    %v234 = vpop.f32.mrf.mxu0
    %v235 = vadd.f32 %v150, %v234
    %v236 = vpop.f32.mrf.mxu0
    %v237 = vpop.f32.mrf.mxu0
    %v238 = vadd.f32 %v150, %v237
    %v239 = vpop.f32.mrf.mxu0
    %240 = vdwg.mxu0
    %v241 = vmax.f32 %v235, 0.0
    %v242 = vmax.f32 %v238, 0.0
    %v243 = vpack.c.bf16 %v242, %v241
    %v244 = vld [vmem:[#allocation4] sm:$0xf]
    %v245 = vld [vmem:[#allocation4 + $0x4] sm:$0xf]
    %v246 = vld [vmem:[#allocation4 + $0x8] sm:$0xf]
    %v247 = vld [vmem:[#allocation4 + $0xc] sm:$0xf]
    %v248 = vld [vmem:[#allocation4 + $0x10] sm:$0xf]
    %v249 = vld [vmem:[#allocation4 + $0x14] sm:$0xf]
    %v250 = vld [vmem:[#allocation4 + $0x18] sm:$0xf]
    %v251 = vld [vmem:[#allocation4 + $0x1c] sm:$0xf]
    %v252 = vld [vmem:[#allocation4 + $0x20] sm:$0xf]
    %v253 = vld [vmem:[#allocation4 + $0x24] sm:$0xf]
    %v254 = vld [vmem:[#allocation4 + $0x28] sm:$0xf]
    %v255 = vld [vmem:[#allocation4 + $0x2c] sm:$0xf]
    %v256 = vld [vmem:[#allocation4 + $0x30] sm:$0xf]
    %v257 = vld [vmem:[#allocation4 + $0x34] sm:$0xf]
    %v258 = vld [vmem:[#allocation4 + $0x38] sm:$0xf]
    %v259 = vld [vmem:[#allocation4 + $0x3c] sm:$0xf]
    %v260 = vld [vmem:[%s6] sm:$0x1]
    %v262 = vlaneseq
    %v263 = vshrl.u32 %v262, 7
    %v264 = vsub.s32 0, %v263
    %v265 = vrot.slane %v260, %v264
    %v283 = vunpack.c.l.b16 %v244
    %v284 = vunpack.c.l.b16 %v245
    %v285 = vunpack.c.l.b16 %v246
    %v286 = vunpack.c.l.b16 %v247
    %v287 = vunpack.c.l.b16 %v248
    %v288 = vunpack.c.l.b16 %v249
    %v289 = vunpack.c.l.b16 %v250
    %v290 = vunpack.c.l.b16 %v251
    %v291 = vunpack.c.l.b16 %v252
    %v292 = vunpack.c.l.b16 %v253
    %v293 = vunpack.c.l.b16 %v254
    %v294 = vunpack.c.l.b16 %v255
    %v295 = vunpack.c.l.b16 %v256
    %v296 = vunpack.c.l.b16 %v257
    %v297 = vunpack.c.l.b16 %v258
    %v298 = vunpack.c.l.b16 %v259
    %v299 = vpack.c.b16 %v284, %v283
    %v300 = vpack.c.b16 %v286, %v285
    %v301 = vpack.c.b16 %v288, %v287
    %v302 = vpack.c.b16 %v290, %v289
    %v303 = vpack.c.b16 %v292, %v291
    %v304 = vpack.c.b16 %v294, %v293
    %v305 = vpack.c.b16 %v296, %v295
    %v306 = vpack.c.b16 %v298, %v297
    %315 = vmatprep.subr.bf16.mxu0 0
    %316 = vmatpush1.bf16.msra.mxu0 %v306
    %317 = vmatprep.subr.bf16.mxu0 0
    %318 = vmatpush1.bf16.msra.mxu0 %v305
    %319 = vmatprep.subr.bf16.mxu0 0
    %320 = vmatpush1.bf16.msra.mxu0 %v304
    %321 = vmatprep.subr.bf16.mxu0 0
    %322 = vmatpush1.bf16.msra.mxu0 %v303
    %323 = vmatprep.subr.bf16.mxu0 0
    %324 = vmatpush1.bf16.msra.mxu0 %v302
    %325 = vmatprep.subr.bf16.mxu0 0
    %326 = vmatpush1.bf16.msra.mxu0 %v301
    %327 = vmatprep.subr.bf16.mxu0 0
    %328 = vmatpush1.bf16.msra.mxu0 %v300
    %329 = vmatprep.subr.bf16.mxu0 0
    %330 = vmatpush1.bf16.msra.mxu0 %v299
    %331 = vmatprep.subr.bf16.mxu0 0
    %332 = vmatpush2.bf16.msra.mxu0 0
    %333 = vmatprep.subr.bf16.mxu0 0
    %334 = vmatpush2.bf16.msra.mxu0 0
    %335 = vmatprep.subr.bf16.mxu0 0
    %336 = vmatpush2.bf16.msra.mxu0 0
    %337 = vmatprep.subr.bf16.mxu0 0
    %338 = vmatpush2.bf16.msra.mxu0 0
    %339 = vmatprep.subr.bf16.mxu0 0
    %340 = vmatpush2.bf16.msra.mxu0 0
    %341 = vmatprep.subr.bf16.mxu0 0
    %342 = vmatpush2.bf16.msra.mxu0 0
    %343 = vmatprep.subr.bf16.mxu0 0
    %344 = vmatpush2.bf16.msra.mxu0 0
    %345 = vmatprep.subr.bf16.mxu0 0
    %346 = vmatpush2.bf16.msra.mxu0 0
    %347 = vmatprep.mubr.bf16.mxu0 0
    %348 = vmatmul.mubr.bf16.gmra.mxu0 %v243
    %v349 = vpop.f32.mrf.mxu0
    %v350 = vadd.f32 %v265, %v349
    %v351 = vpop.f32.mrf.mxu0
    %v352 = vpop.f32.mrf.mxu0
    %v353 = vadd.f32 %v265, %v352
    %v354 = vpop.f32.mrf.mxu0
    %355 = vdwg.mxu0
    %356 = vst [vmem:[%s7] sm:$0xff] %v350
    %357 = vst [vmem:[%s7 + $0x8] sm:$0xff] %v353
    // Predicated region
    $region38: #{neural_net_forward.1} parent=1 // pred_check
      _
    $region39: #{neural_net_forward.1} parent=1 // pred_check_branch
      %359 = sbr.rel (0) target = $region41
    $region40: #{neural_net_forward.1} parent=1 // pred_region
      _
    $region41: #{neural_net_forward.1} parent=1 // pred_fallthru
      _
    // Predicated region
    $region42: #{neural_net_forward.1} parent=1 // pred_check
      _
    $region43: #{neural_net_forward.1} parent=1 // pred_check_branch
      %361 = sbr.rel (0) target = $region45
    $region44: #{neural_net_forward.1} parent=1 // pred_region
      _
    $region45: #{neural_net_forward.1} parent=1 // pred_fallthru
      _
    %362 = vsyncpa [#allocation3], 1
    %363 = vsyncpa [#allocation5], 1

</llo_original>
